<compile_context>
chip_gen: v6e
topology: v6e:2x2x1
jax: 0.10.0
libtpu: 0.0.40
codegen_flags: <defaults>
</compile_context>

<pallas_src>
import functools

import jax
import jax.numpy as jnp
from jax.experimental import pallas as pl
from jax.experimental.pallas import tpu as pltpu


# ---------------------------------------------------------------------------
# helpers
# ---------------------------------------------------------------------------
def _silu_f32(x):
    # SiLU with the sigmoid's divide replaced by an approximate EUP reciprocal:
    # exp and vrcp both run in the EUP slot, keeping the VALU free.
    return x * pl.reciprocal(1.0 + jnp.exp(-x), approx=True)


# ---------------------------------------------------------------------------
# Pallas kernel
# ---------------------------------------------------------------------------
def _fmbconv_kernel(x_ref, wexp_ref, bexp_ref, wproj_ref, mask_ref,
                    bact_ref, bexppre_ref, bprojfold_ref, idscale_ref,
                    o_ref, cols_ref, *, H, W, bb, silu2_bf16):
    N = H * W
    C_in = x_ref.shape[1]
    C_out = o_ref.shape[1]
    cols_dt = cols_ref.dtype

    # pre-activation SiLU + pre-expansion bias (f32 elementwise), then one cast
    # to the im2col dtype (bf16) so all rolls / masks / stores below are half-width.
    xa = x_ref[...] + bact_ref[...]                    # (bb, C_in, N) f32
    xa = _silu_f32(xa)
    xa = (xa + bexppre_ref[...]).astype(cols_dt)

    # im2col: 9 lane-shifted, border-masked taps per batch element, written directly
    # into the (9*C_in, bb*N) VMEM scratch.  Each tap is computed, stored, and dead —
    # no lists, no concatenate copies.  jnp.roll with a static shift lowers to a lane
    # slice+concat (portable for packed bf16 operands); the {0,1} masks are exact in bf16.
    for b in range(bb):                                # static: bb is small
        xab = xa[b]                                    # (C_in, N)
        t = 0
        for dy in (-1, 0, 1):
            for dx in (-1, 0, 1):
                s = dy * W + dx
                if s == 0:
                    tap = xab                          # centre tap: no shift, no mask
                else:
                    shifted = jnp.roll(xab, -s, axis=1)
                    tap = shifted * mask_ref[t]        # (1, N) border mask, zero padding
                cols_ref[t * C_in:(t + 1) * C_in, b * N:(b + 1) * N] = tap
                t += 1

    cols = cols_ref[...]
    if cols.dtype != jnp.bfloat16:                     # f32 fallback path (odd C_in)
        cols = cols.astype(jnp.bfloat16)

    # expansion 3x3 conv == ONE MXU matmul: (C_exp, 9*C_in) @ (9*C_in, bb*N), f32 acc.
    h = jnp.dot(wexp_ref[...], cols,
                preferred_element_type=jnp.float32) + bexp_ref[...]

    # second SiLU: bf16 on v6e/v7x (bf16 VPU+EUP; value feeds a bf16 MXU operand anyway),
    # f32 with approx-reciprocal sigmoid on v5e.
    if silu2_bf16:
        hb = h.astype(jnp.bfloat16)
        hb = hb * jax.nn.sigmoid(hb)
    else:
        hb = _silu_f32(h).astype(jnp.bfloat16)

    # projection 1x1 conv (no bias); pre_proj_bias pre-folded into bprojfold_ref.
    x_res = jnp.dot(wproj_ref[...], hb,
                    preferred_element_type=jnp.float32) + bprojfold_ref[...]

    # identity branch + residual add, lane-dense stores; the id_ext (C_out > C_in) case
    # writes the two channel ranges directly instead of materialising a zeros block.
    for b in range(bb):
        res_b = x_res[:, b * N:(b + 1) * N]            # (C_out, N)
        ident_b = x_ref[b] * idscale_ref[...]          # (C_in, N) f32
        if C_out == C_in:
            o_ref[b] = ident_b + res_b
        else:
            o_ref[b, :C_in, :] = ident_b + res_b[:C_in, :]
            o_ref[b, C_in:, :] = res_b[C_in:, :]


# ---------------------------------------------------------------------------
# Wrapper
# ---------------------------------------------------------------------------
def _device_kind():
    try:
        return jax.devices()[0].device_kind.lower()
    except Exception:
        return ""


def _default_batch_block(B):
    """Keep the grid at >= ~4 steps when the batch allows it so the BlockSpec pipeline
    has something to overlap (DMA of step i+1 / writeback of step i-1 behind compute),
    and so v7x's two TensorCores each get several steps when B >= 4."""
    bb = max(1, B // 4)
    while B % bb:
        bb -= 1
    return bb


def _vmem_limit_bytes(kind, bb, C_in, C_exp, C_out, N):
    est = (2 * bb * C_in * N * 4                      # x, double-buffered (f32)
           + 2 * bb * C_out * N * 4                   # out, double-buffered (f32)
           + 9 * C_in * bb * N * 2                    # im2col scratch (bf16, single buffer)
           + 2 * C_exp * bb * N * 4                   # h + SiLU temporary (f32)
           + 2 * C_out * bb * N * 4                   # x_res temporary (f32)
           + (9 * C_in * C_exp + C_out * C_exp) * 2   # weights (bf16)
           + 2 * 9 * N * 2                            # tap masks (bf16)
           + 8 * (C_in + C_exp + C_out) * 4)          # per-channel biases / scales
    phys = (64 if "v7" in kind else 128) * (1 << 20)  # v7x: 64 MiB/TC, v5e/v6e: 128 MiB
    return int(min(phys - 8 * (1 << 20), max(32 * (1 << 20), 2 * est)))


def fmbconv_forward(x, params, *, batch_block=None, silu2_bf16=None):
    """x: (B, C_in, H, W) float32 (NCHW, like PyTorch)."""
    B, C_in, H, W = x.shape
    N = H * W
    C_exp, wc_in, kh, kw = params["exp_weight"].shape
    C_out = params["proj_weight"].shape[0]
    assert wc_in == C_in and kh == 3 and kw == 3, "kernel implements the 3x3 stride-1 case"
    assert C_out >= C_in
    assert N % 128 == 0, "H*W must be a multiple of 128 for the lane-dense layout"

    kind = _device_kind()
    bb = _default_batch_block(B) if batch_block is None else batch_block
    assert B % bb == 0
    if silu2_bf16 is None:
        silu2_bf16 = ("v6" in kind) or ("v7" in kind)   # bf16 VPU/EUP generations only

    x2 = x.reshape(B, C_in, N).astype(jnp.float32)

    # ---- wrapper-side constant folding / layout prep (no per-pixel compute) ----
    # im2col-ordered expansion weight: (C_exp, 3, 3, C_in) -> (C_exp, 9*C_in); bf16 for MXU
    w_exp = jnp.transpose(params["exp_weight"], (0, 2, 3, 1)).reshape(C_exp, 9 * C_in)
    w_exp_bf16 = w_exp.astype(jnp.bfloat16)
    w_proj = params["proj_weight"].reshape(C_out, C_exp).astype(jnp.float32)
    w_proj_bf16 = w_proj.astype(jnp.bfloat16)
    b_exp = params["exp_bias"].reshape(C_exp, 1).astype(jnp.float32)
    # fold pre_proj_bias through the (linear, un-padded) 1x1 projection: exact in f32
    b_proj_fold = w_proj @ params["pre_proj_bias"].reshape(C_exp, 1).astype(jnp.float32)
    b_act = params["pre_act_bias"].reshape(C_in, 1).astype(jnp.float32)
    b_exp_pre = params["pre_exp_bias"].reshape(C_in, 1).astype(jnp.float32)
    id_scale = params["id_scale"].reshape(C_in, 1).astype(jnp.float32)

    # {0,1} border masks for the 9 conv taps (zero-padding semantics), streamed as bf16
    # in a (9, 1, N) layout: mask_ref[t] is an aligned full-slice read in the kernel.
    ii = jnp.arange(N, dtype=jnp.int32) // W
    jj = jnp.arange(N, dtype=jnp.int32) % W
    masks = []
    for dy in (-1, 0, 1):
        for dx in (-1, 0, 1):
            ok = (ii + dy >= 0) & (ii + dy < H) & (jj + dx >= 0) & (jj + dx < W)
            masks.append(ok)
    tap_mask = jnp.stack(masks).astype(jnp.bfloat16).reshape(9, 1, N)

    # bf16 im2col scratch needs even per-tap channel offsets (bf16 packs 2 rows/word);
    # fall back to f32 scratch for odd C_in.
    cols_dtype = jnp.bfloat16 if C_in % 2 == 0 else jnp.float32

    const = lambda shape: pl.BlockSpec(shape, lambda g, _s=shape: (0,) * len(_s))
    kernel = functools.partial(_fmbconv_kernel, H=H, W=W, bb=bb, silu2_bf16=silu2_bf16)

    out = pl.pallas_call(
        kernel,
        out_shape=jax.ShapeDtypeStruct((B, C_out, N), jnp.float32),
        grid=(B // bb,),
        in_specs=[
            pl.BlockSpec((bb, C_in, N), lambda g: (g, 0, 0)),   # x
            const((C_exp, 9 * C_in)),                           # expansion weight (bf16)
            const((C_exp, 1)),                                  # expansion bias
            const((C_out, C_exp)),                              # projection weight (bf16)
            const((9, 1, N)),                                   # tap border masks (bf16)
            const((C_in, 1)),                                   # pre_act_bias
            const((C_in, 1)),                                   # pre_exp_bias
            const((C_out, 1)),                                  # W_proj @ pre_proj_bias
            const((C_in, 1)),                                   # id_scale
        ],
        out_specs=pl.BlockSpec((bb, C_out, N), lambda g: (g, 0, 0)),
        scratch_shapes=[pltpu.VMEM((9 * C_in, bb * N), cols_dtype)],   # im2col scratch
        compiler_params=pltpu.CompilerParams(
            dimension_semantics=("parallel",),
            vmem_limit_bytes=_vmem_limit_bytes(kind, bb, C_in, C_exp, C_out, N)),
    )(x2, w_exp_bf16, b_exp, w_proj_bf16, tap_mask,
      b_act, b_exp_pre, b_proj_fold, id_scale)

    return out.reshape(B, C_out, H, W)


# ---------------------------------------------------------------------------
# Pure-JAX reference (mirrors the PyTorch forward exactly, all f32)
# ---------------------------------------------------------------------------
def fmbconv_reference(x, params):
    B, C_in, H, W = x.shape
    C_exp = params["exp_weight"].shape[0]
    C_out = params["proj_weight"].shape[0]

    xr = x + params["pre_act_bias"].reshape(1, C_in, 1, 1)
    xr = xr * jax.nn.sigmoid(xr)                               # SiLU
    xr = xr + params["pre_exp_bias"].reshape(1, C_in, 1, 1)
    xr = jax.lax.conv_general_dilated(
        xr, params["exp_weight"], window_strides=(1, 1),
        padding=((1, 1), (1, 1)),
        dimension_numbers=("NCHW", "OIHW", "NCHW"))
    xr = xr + params["exp_bias"].reshape(1, C_exp, 1, 1)
    xr = xr * jax.nn.sigmoid(xr)                               # SiLU
    xr = xr + params["pre_proj_bias"].reshape(1, C_exp, 1, 1)
    wp = params["proj_weight"].reshape(C_out, C_exp)
    xr = jnp.einsum("of,bfhw->bohw", wp, xr)

    ident = x * params["id_scale"].reshape(1, C_in, 1, 1)
    if C_out != C_in:
        ident = jnp.pad(ident, ((0, 0), (0, C_out - C_in), (0, 0), (0, 0)))
    return ident + xr


# ---------------------------------------------------------------------------
if __name__ == "__main__":
    # module config: in_channels=out_channels=4, expansion_ratio=2 -> exp_channels=8,
    # kernel_size=3, padding=1, downscale=False, dim=2, H=W=16
    B, C_in, H, W = 2, 4, 16, 16
    C_exp = int(C_in * 2)
    C_out = C_in                      # identity-preserving config (id_ext is None)

    key = jax.random.PRNGKey(0)
    ks = jax.random.split(key, 8)

    # deterministic synthetic parameters (non-zero so every path is exercised;
    # the PyTorch init would zero proj_weight, which would hide bugs)
    params = {
        "exp_weight":    0.1 * jax.random.normal(ks[0], (C_exp, C_in, 3, 3), jnp.float32),
        "exp_bias":      0.1 * jax.random.normal(ks[1], (C_exp,), jnp.float32),
        "proj_weight":   0.1 * jax.random.normal(ks[2], (C_out, C_exp, 1, 1), jnp.float32),
        "pre_act_bias":  0.1 * jax.random.normal(ks[3], (C_in,), jnp.float32),
        "pre_exp_bias":  0.1 * jax.random.normal(ks[4], (C_in,), jnp.float32),
        "pre_proj_bias": 0.1 * jax.random.normal(ks[5], (C_exp,), jnp.float32),
        "id_scale": jnp.ones((C_in,), jnp.float32)
                    + 0.05 * jax.random.normal(ks[6], (C_in,), jnp.float32),
    }
    x = jax.random.normal(ks[7], (B, C_in, H, W), jnp.float32)

    out = fmbconv_forward(x, params)
    out = jax.block_until_ready(out)
    ref = fmbconv_reference(x, params)

    assert out.shape == (B, C_out, H, W)
    err = float(jnp.max(jnp.abs(out - ref)))
    # bf16 MXU operands (f32 accumulation), bf16 im2col/masks and the approximate-
    # reciprocal sigmoid bound the error well below 3e-2 at these magnitudes.
    assert err < 3e-2, f"max abs err = {err}"
    print("KERNEL_OK")
</pallas_src>

<mosaic_0001>
module attributes {stable_mosaic.version = 11 : i64} {
  func.func @_fmbconv_kernel(%arg0: i32, %arg1: memref<1x4x256xf32, #tpu.memory_space<vmem>>, %arg2: memref<8x36xbf16, #tpu.memory_space<vmem>>, %arg3: memref<8x1xf32, #tpu.memory_space<vmem>>, %arg4: memref<4x8xbf16, #tpu.memory_space<vmem>>, %arg5: memref<9x1x256xbf16, #tpu.memory_space<vmem>>, %arg6: memref<4x1xf32, #tpu.memory_space<vmem>>, %arg7: memref<4x1xf32, #tpu.memory_space<vmem>>, %arg8: memref<4x1xf32, #tpu.memory_space<vmem>>, %arg9: memref<4x1xf32, #tpu.memory_space<vmem>>, %arg10: memref<1x4x256xf32, #tpu.memory_space<vmem>>, %arg11: memref<36x256xbf16, #tpu.memory_space<vmem>>) attributes {dimension_semantics = [#tpu.dimension_semantics<parallel>], iteration_bounds = array<i64: 2>, scalar_prefetch = 0 : i64, scratch_operands = 1 : i64, tpu.core_type = #tpu.core_type<tc>, window_params = [{transform_indices = @transform_0, window_bounds = array<i64: 1, 4, 256>}, {pipeline_mode = #tpu.pipeline_mode<synchronous>, transform_indices = @transform_1, window_bounds = array<i64: 8, 36>}, {pipeline_mode = #tpu.pipeline_mode<synchronous>, transform_indices = @transform_2, window_bounds = array<i64: 8, 1>}, {pipeline_mode = #tpu.pipeline_mode<synchronous>, transform_indices = @transform_3, window_bounds = array<i64: 4, 8>}, {pipeline_mode = #tpu.pipeline_mode<synchronous>, transform_indices = @transform_4, window_bounds = array<i64: 9, 1, 256>}, {pipeline_mode = #tpu.pipeline_mode<synchronous>, transform_indices = @transform_5, window_bounds = array<i64: 4, 1>}, {pipeline_mode = #tpu.pipeline_mode<synchronous>, transform_indices = @transform_6, window_bounds = array<i64: 4, 1>}, {pipeline_mode = #tpu.pipeline_mode<synchronous>, transform_indices = @transform_7, window_bounds = array<i64: 4, 1>}, {pipeline_mode = #tpu.pipeline_mode<synchronous>, transform_indices = @transform_8, window_bounds = array<i64: 4, 1>}, {transform_indices = @transform_9, window_bounds = array<i64: 1, 4, 256>}]} {
    %c0 = arith.constant 0 : index
    %c0_0 = arith.constant 0 : index
    %c0_1 = arith.constant 0 : index
    %0 = vector.load %arg1[%c0, %c0_0, %c0_1] : memref<1x4x256xf32, #tpu.memory_space<vmem>>, vector<1x4x256xf32>
    %c0_2 = arith.constant 0 : index
    %c0_3 = arith.constant 0 : index
    %1 = vector.load %arg6[%c0_2, %c0_3] : memref<4x1xf32, #tpu.memory_space<vmem>>, vector<4x1xf32>
    %2 = vector.shape_cast %1 : vector<4x1xf32> to vector<1x4x1xf32>
    %3 = vector.broadcast %2 : vector<1x4x1xf32> to vector<1x4x256xf32>
    %4 = arith.addf %0, %3 : vector<1x4x256xf32>
    %cst = arith.constant 0.000000e+00 : f32
    %5 = vector.broadcast %cst : f32 to vector<1x4x256xf32>
    %6 = arith.subf %5, %4 : vector<1x4x256xf32>
    %7 = math.exp %6 : vector<1x4x256xf32>
    %cst_4 = arith.constant 1.000000e+00 : f32
    %8 = vector.broadcast %cst_4 : f32 to vector<1x4x256xf32>
    %9 = arith.addf %8, %7 : vector<1x4x256xf32>
    %10 = tpu.reciprocal %9 {approx = true} : vector<1x4x256xf32> -> vector<1x4x256xf32>
    %11 = arith.mulf %4, %10 : vector<1x4x256xf32>
    %c0_5 = arith.constant 0 : index
    %c0_6 = arith.constant 0 : index
    %12 = vector.load %arg7[%c0_5, %c0_6] : memref<4x1xf32, #tpu.memory_space<vmem>>, vector<4x1xf32>
    %13 = vector.shape_cast %12 : vector<4x1xf32> to vector<1x4x1xf32>
    %14 = vector.broadcast %13 : vector<1x4x1xf32> to vector<1x4x256xf32>
    %15 = arith.addf %11, %14 : vector<1x4x256xf32>
    %16 = arith.truncf %15 : vector<1x4x256xf32> to vector<1x4x256xbf16>
    %17 = vector.shape_cast %16 : vector<1x4x256xbf16> to vector<4x256xbf16>
    %18 = vector.extract_strided_slice %17 {offsets = [0, 239], sizes = [4, 17], strides = [1, 1]} : vector<4x256xbf16> to vector<4x17xbf16>
    %19 = vector.extract_strided_slice %17 {offsets = [0, 0], sizes = [4, 239], strides = [1, 1]} : vector<4x256xbf16> to vector<4x239xbf16>
    %20 = tpu.concatenate %18, %19 in 1 : vector<4x17xbf16>, vector<4x239xbf16> -> vector<4x256xbf16>
    %c0_7 = arith.constant 0 : index
    %c0_8 = arith.constant 0 : index
    %c0_9 = arith.constant 0 : index
    %21 = vector.load %arg5[%c0_7, %c0_8, %c0_9] : memref<9x1x256xbf16, #tpu.memory_space<vmem>>, vector<1x1x256xbf16>
    %22 = vector.shape_cast %21 : vector<1x1x256xbf16> to vector<1x256xbf16>
    %23 = vector.broadcast %22 : vector<1x256xbf16> to vector<4x256xbf16>
    %24 = arith.mulf %20, %23 : vector<4x256xbf16>
    %c0_10 = arith.constant 0 : index
    %c0_11 = arith.constant 0 : index
    %25 = vector.load %arg11[%c0_10, %c0_11] : memref<36x256xbf16, #tpu.memory_space<vmem>>, vector<4x256xbf16>
    tpu.vector_store %arg11[%c0_10, %c0_11], %24 {strides = array<i32>} : memref<36x256xbf16, #tpu.memory_space<vmem>>, vector<4x256xbf16>,
    %26 = vector.extract_strided_slice %17 {offsets = [0, 240], sizes = [4, 16], strides = [1, 1]} : vector<4x256xbf16> to vector<4x16xbf16>
    %27 = vector.extract_strided_slice %17 {offsets = [0, 0], sizes = [4, 240], strides = [1, 1]} : vector<4x256xbf16> to vector<4x240xbf16>
    %28 = tpu.concatenate %26, %27 in 1 : vector<4x16xbf16>, vector<4x240xbf16> -> vector<4x256xbf16>
    %c1 = arith.constant 1 : index
    %c0_12 = arith.constant 0 : index
    %c0_13 = arith.constant 0 : index
    %29 = vector.load %arg5[%c1, %c0_12, %c0_13] : memref<9x1x256xbf16, #tpu.memory_space<vmem>>, vector<1x1x256xbf16>
    %30 = vector.shape_cast %29 : vector<1x1x256xbf16> to vector<1x256xbf16>
    %31 = vector.broadcast %30 : vector<1x256xbf16> to vector<4x256xbf16>
    %32 = arith.mulf %28, %31 : vector<4x256xbf16>
    %c4 = arith.constant 4 : index
    %c0_14 = arith.constant 0 : index
    %33 = vector.load %arg11[%c4, %c0_14] : memref<36x256xbf16, #tpu.memory_space<vmem>>, vector<4x256xbf16>
    tpu.vector_store %arg11[%c4, %c0_14], %32 {strides = array<i32>} : memref<36x256xbf16, #tpu.memory_space<vmem>>, vector<4x256xbf16>,
    %34 = vector.extract_strided_slice %17 {offsets = [0, 241], sizes = [4, 15], strides = [1, 1]} : vector<4x256xbf16> to vector<4x15xbf16>
    %35 = vector.extract_strided_slice %17 {offsets = [0, 0], sizes = [4, 241], strides = [1, 1]} : vector<4x256xbf16> to vector<4x241xbf16>
    %36 = tpu.concatenate %34, %35 in 1 : vector<4x15xbf16>, vector<4x241xbf16> -> vector<4x256xbf16>
    %c2 = arith.constant 2 : index
    %c0_15 = arith.constant 0 : index
    %c0_16 = arith.constant 0 : index
    %37 = vector.load %arg5[%c2, %c0_15, %c0_16] : memref<9x1x256xbf16, #tpu.memory_space<vmem>>, vector<1x1x256xbf16>
    %38 = vector.shape_cast %37 : vector<1x1x256xbf16> to vector<1x256xbf16>
    %39 = vector.broadcast %38 : vector<1x256xbf16> to vector<4x256xbf16>
    %40 = arith.mulf %36, %39 : vector<4x256xbf16>
    %c8 = arith.constant 8 : index
    %c0_17 = arith.constant 0 : index
    %41 = vector.load %arg11[%c8, %c0_17] : memref<36x256xbf16, #tpu.memory_space<vmem>>, vector<4x256xbf16>
    tpu.vector_store %arg11[%c8, %c0_17], %40 {strides = array<i32>} : memref<36x256xbf16, #tpu.memory_space<vmem>>, vector<4x256xbf16>,
    %42 = vector.extract_strided_slice %17 {offsets = [0, 255], sizes = [4, 1], strides = [1, 1]} : vector<4x256xbf16> to vector<4x1xbf16>
    %43 = vector.extract_strided_slice %17 {offsets = [0, 0], sizes = [4, 255], strides = [1, 1]} : vector<4x256xbf16> to vector<4x255xbf16>
    %44 = tpu.concatenate %42, %43 in 1 : vector<4x1xbf16>, vector<4x255xbf16> -> vector<4x256xbf16>
    %c3 = arith.constant 3 : index
    %c0_18 = arith.constant 0 : index
    %c0_19 = arith.constant 0 : index
    %45 = vector.load %arg5[%c3, %c0_18, %c0_19] : memref<9x1x256xbf16, #tpu.memory_space<vmem>>, vector<1x1x256xbf16>
    %46 = vector.shape_cast %45 : vector<1x1x256xbf16> to vector<1x256xbf16>
    %47 = vector.broadcast %46 : vector<1x256xbf16> to vector<4x256xbf16>
    %48 = arith.mulf %44, %47 : vector<4x256xbf16>
    %c12 = arith.constant 12 : index
    %c0_20 = arith.constant 0 : index
    %49 = vector.load %arg11[%c12, %c0_20] : memref<36x256xbf16, #tpu.memory_space<vmem>>, vector<4x256xbf16>
    tpu.vector_store %arg11[%c12, %c0_20], %48 {strides = array<i32>} : memref<36x256xbf16, #tpu.memory_space<vmem>>, vector<4x256xbf16>,
    %c16 = arith.constant 16 : index
    %c0_21 = arith.constant 0 : index
    %50 = vector.load %arg11[%c16, %c0_21] : memref<36x256xbf16, #tpu.memory_space<vmem>>, vector<4x256xbf16>
    tpu.vector_store %arg11[%c16, %c0_21], %17 {strides = array<i32>} : memref<36x256xbf16, #tpu.memory_space<vmem>>, vector<4x256xbf16>,
    %51 = vector.extract_strided_slice %17 {offsets = [0, 1], sizes = [4, 255], strides = [1, 1]} : vector<4x256xbf16> to vector<4x255xbf16>
    %52 = vector.extract_strided_slice %17 {offsets = [0, 0], sizes = [4, 1], strides = [1, 1]} : vector<4x256xbf16> to vector<4x1xbf16>
    %53 = tpu.concatenate %51, %52 in 1 : vector<4x255xbf16>, vector<4x1xbf16> -> vector<4x256xbf16>
    %c5 = arith.constant 5 : index
    %c0_22 = arith.constant 0 : index
    %c0_23 = arith.constant 0 : index
    %54 = vector.load %arg5[%c5, %c0_22, %c0_23] : memref<9x1x256xbf16, #tpu.memory_space<vmem>>, vector<1x1x256xbf16>
    %55 = vector.shape_cast %54 : vector<1x1x256xbf16> to vector<1x256xbf16>
    %56 = vector.broadcast %55 : vector<1x256xbf16> to vector<4x256xbf16>
    %57 = arith.mulf %53, %56 : vector<4x256xbf16>
    %c20 = arith.constant 20 : index
    %c0_24 = arith.constant 0 : index
    %58 = vector.load %arg11[%c20, %c0_24] : memref<36x256xbf16, #tpu.memory_space<vmem>>, vector<4x256xbf16>
    tpu.vector_store %arg11[%c20, %c0_24], %57 {strides = array<i32>} : memref<36x256xbf16, #tpu.memory_space<vmem>>, vector<4x256xbf16>,
    %59 = vector.extract_strided_slice %17 {offsets = [0, 15], sizes = [4, 241], strides = [1, 1]} : vector<4x256xbf16> to vector<4x241xbf16>
    %60 = vector.extract_strided_slice %17 {offsets = [0, 0], sizes = [4, 15], strides = [1, 1]} : vector<4x256xbf16> to vector<4x15xbf16>
    %61 = tpu.concatenate %59, %60 in 1 : vector<4x241xbf16>, vector<4x15xbf16> -> vector<4x256xbf16>
    %c6 = arith.constant 6 : index
    %c0_25 = arith.constant 0 : index
    %c0_26 = arith.constant 0 : index
    %62 = vector.load %arg5[%c6, %c0_25, %c0_26] : memref<9x1x256xbf16, #tpu.memory_space<vmem>>, vector<1x1x256xbf16>
    %63 = vector.shape_cast %62 : vector<1x1x256xbf16> to vector<1x256xbf16>
    %64 = vector.broadcast %63 : vector<1x256xbf16> to vector<4x256xbf16>
    %65 = arith.mulf %61, %64 : vector<4x256xbf16>
    %c24 = arith.constant 24 : index
    %c0_27 = arith.constant 0 : index
    %66 = vector.load %arg11[%c24, %c0_27] : memref<36x256xbf16, #tpu.memory_space<vmem>>, vector<4x256xbf16>
    tpu.vector_store %arg11[%c24, %c0_27], %65 {strides = array<i32>} : memref<36x256xbf16, #tpu.memory_space<vmem>>, vector<4x256xbf16>,
    %67 = vector.extract_strided_slice %17 {offsets = [0, 16], sizes = [4, 240], strides = [1, 1]} : vector<4x256xbf16> to vector<4x240xbf16>
    %68 = vector.extract_strided_slice %17 {offsets = [0, 0], sizes = [4, 16], strides = [1, 1]} : vector<4x256xbf16> to vector<4x16xbf16>
    %69 = tpu.concatenate %67, %68 in 1 : vector<4x240xbf16>, vector<4x16xbf16> -> vector<4x256xbf16>
    %c7 = arith.constant 7 : index
    %c0_28 = arith.constant 0 : index
    %c0_29 = arith.constant 0 : index
    %70 = vector.load %arg5[%c7, %c0_28, %c0_29] : memref<9x1x256xbf16, #tpu.memory_space<vmem>>, vector<1x1x256xbf16>
    %71 = vector.shape_cast %70 : vector<1x1x256xbf16> to vector<1x256xbf16>
    %72 = vector.broadcast %71 : vector<1x256xbf16> to vector<4x256xbf16>
    %73 = arith.mulf %69, %72 : vector<4x256xbf16>
    %c28 = arith.constant 28 : index
    %c0_30 = arith.constant 0 : index
    %74 = vector.load %arg11[%c28, %c0_30] : memref<36x256xbf16, #tpu.memory_space<vmem>>, vector<4x256xbf16>
    tpu.vector_store %arg11[%c28, %c0_30], %73 {strides = array<i32>} : memref<36x256xbf16, #tpu.memory_space<vmem>>, vector<4x256xbf16>,
    %75 = vector.extract_strided_slice %17 {offsets = [0, 17], sizes = [4, 239], strides = [1, 1]} : vector<4x256xbf16> to vector<4x239xbf16>
    %76 = vector.extract_strided_slice %17 {offsets = [0, 0], sizes = [4, 17], strides = [1, 1]} : vector<4x256xbf16> to vector<4x17xbf16>
    %77 = tpu.concatenate %75, %76 in 1 : vector<4x239xbf16>, vector<4x17xbf16> -> vector<4x256xbf16>
    %c8_31 = arith.constant 8 : index
    %c0_32 = arith.constant 0 : index
    %c0_33 = arith.constant 0 : index
    %78 = vector.load %arg5[%c8_31, %c0_32, %c0_33] : memref<9x1x256xbf16, #tpu.memory_space<vmem>>, vector<1x1x256xbf16>
    %79 = vector.shape_cast %78 : vector<1x1x256xbf16> to vector<1x256xbf16>
    %80 = vector.broadcast %79 : vector<1x256xbf16> to vector<4x256xbf16>
    %81 = arith.mulf %77, %80 : vector<4x256xbf16>
    %c32 = arith.constant 32 : index
    %c0_34 = arith.constant 0 : index
    %82 = vector.load %arg11[%c32, %c0_34] : memref<36x256xbf16, #tpu.memory_space<vmem>>, vector<4x256xbf16>
    tpu.vector_store %arg11[%c32, %c0_34], %81 {strides = array<i32>} : memref<36x256xbf16, #tpu.memory_space<vmem>>, vector<4x256xbf16>,
    %c0_35 = arith.constant 0 : index
    %c0_36 = arith.constant 0 : index
    %83 = vector.load %arg11[%c0_35, %c0_36] : memref<36x256xbf16, #tpu.memory_space<vmem>>, vector<36x256xbf16>
    %c0_37 = arith.constant 0 : index
    %c0_38 = arith.constant 0 : index
    %84 = vector.load %arg2[%c0_37, %c0_38] : memref<8x36xbf16, #tpu.memory_space<vmem>>, vector<8x36xbf16>
    %cst_39 = arith.constant dense<0.000000e+00> : vector<8x256xf32>
    %85 = tpu.matmul %84, %83, %cst_39 {dimension_numbers = #tpu.dot_dimension_numbers<[1], [0], [0], [1], [0, 0, 1, 1], [], []>} : vector<8x36xbf16>, vector<36x256xbf16>, vector<8x256xf32> -> vector<8x256xf32>
    %c0_40 = arith.constant 0 : index
    %c0_41 = arith.constant 0 : index
    %86 = vector.load %arg3[%c0_40, %c0_41] : memref<8x1xf32, #tpu.memory_space<vmem>>, vector<8x1xf32>
    %87 = vector.broadcast %86 : vector<8x1xf32> to vector<8x256xf32>
    %88 = arith.addf %85, %87 : vector<8x256xf32>
    %cst_42 = arith.constant 0.000000e+00 : f32
    %89 = vector.broadcast %cst_42 : f32 to vector<8x256xf32>
    %90 = arith.subf %89, %88 : vector<8x256xf32>
    %91 = math.exp %90 : vector<8x256xf32>
    %cst_43 = arith.constant 1.000000e+00 : f32
    %92 = vector.broadcast %cst_43 : f32 to vector<8x256xf32>
    %93 = arith.addf %92, %91 : vector<8x256xf32>
    %94 = tpu.reciprocal %93 {approx = true} : vector<8x256xf32> -> vector<8x256xf32>
    %95 = arith.mulf %88, %94 : vector<8x256xf32>
    %96 = arith.truncf %95 : vector<8x256xf32> to vector<8x256xbf16>
    %c0_44 = arith.constant 0 : index
    %c0_45 = arith.constant 0 : index
    %97 = vector.load %arg4[%c0_44, %c0_45] : memref<4x8xbf16, #tpu.memory_space<vmem>>, vector<4x8xbf16>
    %cst_46 = arith.constant dense<0.000000e+00> : vector<4x256xf32>
    %98 = tpu.matmul %97, %96, %cst_46 {dimension_numbers = #tpu.dot_dimension_numbers<[1], [0], [0], [1], [0, 0, 1, 1], [], []>} : vector<4x8xbf16>, vector<8x256xbf16>, vector<4x256xf32> -> vector<4x256xf32>
    %c0_47 = arith.constant 0 : index
    %c0_48 = arith.constant 0 : index
    %99 = vector.load %arg8[%c0_47, %c0_48] : memref<4x1xf32, #tpu.memory_space<vmem>>, vector<4x1xf32>
    %100 = vector.broadcast %99 : vector<4x1xf32> to vector<4x256xf32>
    %101 = arith.addf %98, %100 : vector<4x256xf32>
    %c0_49 = arith.constant 0 : index
    %c0_50 = arith.constant 0 : index
    %c0_51 = arith.constant 0 : index
    %102 = vector.load %arg1[%c0_49, %c0_50, %c0_51] : memref<1x4x256xf32, #tpu.memory_space<vmem>>, vector<1x4x256xf32>
    %103 = vector.shape_cast %102 : vector<1x4x256xf32> to vector<4x256xf32>
    %c0_52 = arith.constant 0 : index
    %c0_53 = arith.constant 0 : index
    %104 = vector.load %arg9[%c0_52, %c0_53] : memref<4x1xf32, #tpu.memory_space<vmem>>, vector<4x1xf32>
    %105 = vector.broadcast %104 : vector<4x1xf32> to vector<4x256xf32>
    %106 = arith.mulf %103, %105 : vector<4x256xf32>
    %107 = arith.addf %106, %101 : vector<4x256xf32>
    %c0_54 = arith.constant 0 : index
    %c0_55 = arith.constant 0 : index
    %c0_56 = arith.constant 0 : index
    %108 = vector.load %arg10[%c0_54, %c0_55, %c0_56] : memref<1x4x256xf32, #tpu.memory_space<vmem>>, vector<1x4x256xf32>
    %109 = vector.shape_cast %108 : vector<1x4x256xf32> to vector<4x256xf32>
    %110 = vector.shape_cast %107 : vector<4x256xf32> to vector<1x4x256xf32>
    tpu.vector_store %arg10[%c0_54, %c0_55, %c0_56], %110 {strides = array<i32>} : memref<1x4x256xf32, #tpu.memory_space<vmem>>, vector<1x4x256xf32>,
    return
  }
  func.func @transform_0(%arg0: i32) -> (i32, i32, i32) {
    %c0_i32 = arith.constant 0 : i32
    %c0_i32_0 = arith.constant 0 : i32
    %c0_i32_1 = arith.constant 0 : i32
    return %arg0, %c0_i32, %c0_i32_0 : i32, i32, i32
  }
  func.func @transform_1(%arg0: i32) -> (i32, i32) {
    %c0_i32 = arith.constant 0 : i32
    %c0_i32_0 = arith.constant 0 : i32
    %c0_i32_1 = arith.constant 0 : i32
    return %c0_i32, %c0_i32_0 : i32, i32
  }
  func.func @transform_2(%arg0: i32) -> (i32, i32) {
    %c0_i32 = arith.constant 0 : i32
    %c0_i32_0 = arith.constant 0 : i32
    %c0_i32_1 = arith.constant 0 : i32
    return %c0_i32, %c0_i32_0 : i32, i32
  }
  func.func @transform_3(%arg0: i32) -> (i32, i32) {
    %c0_i32 = arith.constant 0 : i32
    %c0_i32_0 = arith.constant 0 : i32
    %c0_i32_1 = arith.constant 0 : i32
    return %c0_i32, %c0_i32_0 : i32, i32
  }
  func.func @transform_4(%arg0: i32) -> (i32, i32, i32) {
    %c0_i32 = arith.constant 0 : i32
    %c0_i32_0 = arith.constant 0 : i32
    %c0_i32_1 = arith.constant 0 : i32
    %c0_i32_2 = arith.constant 0 : i32
    return %c0_i32, %c0_i32_0, %c0_i32_1 : i32, i32, i32
  }
  func.func @transform_5(%arg0: i32) -> (i32, i32) {
    %c0_i32 = arith.constant 0 : i32
    %c0_i32_0 = arith.constant 0 : i32
    %c0_i32_1 = arith.constant 0 : i32
    return %c0_i32, %c0_i32_0 : i32, i32
  }
  func.func @transform_6(%arg0: i32) -> (i32, i32) {
    %c0_i32 = arith.constant 0 : i32
    %c0_i32_0 = arith.constant 0 : i32
    %c0_i32_1 = arith.constant 0 : i32
    return %c0_i32, %c0_i32_0 : i32, i32
  }
  func.func @transform_7(%arg0: i32) -> (i32, i32) {
    %c0_i32 = arith.constant 0 : i32
    %c0_i32_0 = arith.constant 0 : i32
    %c0_i32_1 = arith.constant 0 : i32
    return %c0_i32, %c0_i32_0 : i32, i32
  }
  func.func @transform_8(%arg0: i32) -> (i32, i32) {
    %c0_i32 = arith.constant 0 : i32
    %c0_i32_0 = arith.constant 0 : i32
    %c0_i32_1 = arith.constant 0 : i32
    return %c0_i32, %c0_i32_0 : i32, i32
  }
  func.func @transform_9(%arg0: i32) -> (i32, i32, i32) {
    %c0_i32 = arith.constant 0 : i32
    %c0_i32_0 = arith.constant 0 : i32
    %c0_i32_1 = arith.constant 0 : i32
    return %arg0, %c0_i32, %c0_i32_0 : i32, i32, i32
  }
}

</mosaic_0001>

<llo_original>
// kernel: tpu_custom_call.1
$region0: #{tpu_custom_call.1}
  #allocation0 [shape = 'u32[]', space=smem, size = 0x4, offset = 0x4, fixed_abs, tag = 'smem constant byte address 0x4 - core index']
  #allocation1 [shape = 'u32[144,128]{1,0:T(1,128)}', space=vmem, size = 0x12000, scoped, tag = 'internal scratch']
  #allocation2 [shape = 'bf16[36,256]{1,0:T(8,128)(2,1)}', space=vmem, size = 0x5000, scoped, tag = 'scratch operand']
  %s0 = inlined_call_operand.vmem [shape: f32[2,4,256], index: 0, kind: input, shape index: {}]
  %s1 = inlined_call_operand.vmem [shape: bf16[8,36], index: 1, kind: input, shape index: {}]
  %s2 = inlined_call_operand.vmem [shape: f32[8,1], index: 2, kind: input, shape index: {}]
  %s3 = inlined_call_operand.vmem [shape: bf16[4,8], index: 3, kind: input, shape index: {}]
  %s4 = inlined_call_operand.vmem [shape: bf16[9,1,256], index: 4, kind: input, shape index: {}]
  %s5 = inlined_call_operand.vmem [shape: f32[4,1], index: 5, kind: input, shape index: {}]
  %s6 = inlined_call_operand.vmem [shape: f32[4,1], index: 6, kind: input, shape index: {}]
  %s7 = inlined_call_operand.vmem [shape: f32[4,1], index: 7, kind: input, shape index: {}]
  %s8 = inlined_call_operand.vmem [shape: f32[4,1], index: 8, kind: input, shape index: {}]
  %s9 = inlined_call_operand.hbm [shape: f32[2,4,256], index: 9, kind: output, shape index: {}]
  %s10 = sld [smem:[#allocation0]]
  $region69: #{tpu_custom_call.1} parent=0
    _
  %s12 = ssub.s32 1, %s10
  %s13 = scalar_select 0, %s12, %s10
  $region1: #{tpu_custom_call.1} parent=0
    #allocation3 [shape = 'u8[8192]{0}', space=vmem, size = 0x2000, scoped, tag = 'output window, operand 0']
    #allocation4 [shape = 's32[2]{0}', space=sflag, size = 0x8, scoped, tag = 'scoped memory for tpu_custom_call.1']
    %14 = vsyncpa [#allocation4], 0
    %s15 = scalar_lea.sflag [#allocation4], 1
    %16 = vsyncpa %s15, 0
    loop: start=0, step=1, limit=4
    $region2: #{tpu_custom_call.1} parent=1 // loop_pre_header
      _
    $region3: #{tpu_custom_call.1} parent=1 // loop_header
      %s18 = sphi 0, %s22
      %p19 = scmp.ge.s32.totalorder %s18, 4
      %s28 = sphi 0, %s30
      %s31 = sphi 0, %s28
      %s32 = sphi 0, %s31
      %s48 = sphi 0, %s32
      %s52 = sphi 0, %s52
      %s54 = sphi 0, %s52
      %s55 = sphi 0, %s54
      %s69 = sphi 0, %s55
      %s73 = sphi 0, %s73
      %s75 = sphi 0, %s73
      %s76 = sphi 0, %s75
      %s90 = sphi 0, %s76
      %s94 = sphi 0, %s94
      %s96 = sphi 0, %s94
      %s97 = sphi 0, %s96
      %s111 = sphi 0, %s97
      %s115 = sphi 0, %s115
      %s117 = sphi 0, %s115
      %s118 = sphi 0, %s117
      %s132 = sphi 0, %s118
      %s136 = sphi 0, %s136
      %s138 = sphi 0, %s136
      %s139 = sphi 0, %s138
      %s153 = sphi 0, %s139
      %s157 = sphi 0, %s157
      %s159 = sphi 0, %s157
      %s160 = sphi 0, %s159
      %s174 = sphi 0, %s160
      %s178 = sphi 0, %s178
      %s180 = sphi 0, %s178
      %s181 = sphi 0, %s180
      %s195 = sphi 0, %s181
      %s199 = sphi 0, %s199
      %s201 = sphi 0, %s199
      %s202 = sphi 0, %s201
      %s216 = sphi 0, %s202
      %s222 = sphi 0, %s224
      %s225 = sphi 0, %s222
      %s226 = sphi 0, %s225
      %s242 = sphi 0, %s226
    $region4: #{tpu_custom_call.1} parent=1 // loop_header_branch
      %21 = sbr.rel (%p19) target = $region8
    $region5: #{tpu_custom_call.1} parent=1 // loop_body
      %s23 = ssub.s32 %s18, 1
      %s24 = ssub.s32 %s18, 2
      %s25 = sadd.s32 %s18, 1
      %s26 = ssub.s32 %s18, %s25
      %p27 = scmp.eq.s32.totalorder %s26, 0
      %s29 = sadd.s32 %s28, 1
      %s30 = scalar_select %p27, %s28, %s29
      %p33 = pneg %p27
      %p34 = scmp.eq.s32.totalorder %s18, 1
      %p35 = por %p33, %p34
      %p36 = scmp.ne.s32.totalorder %s28, %s31
      %p37 = scmp.eq.s32.totalorder %s18, 0
      %p38 = por %p36, %p37
      %p39 = scmp.ne.s32.totalorder %s28, %s31
      %p40 = scmp.eq.s32.totalorder %s23, 1
      %p41 = por %p39, %p40
      %p42 = scmp.ne.s32.totalorder %s31, %s32
      %p43 = scmp.eq.s32.totalorder %s23, 0
      %p44 = por %p42, %p43
      %p45 = scmp.ne.s32.totalorder %s31, %s32
      %p46 = scmp.eq.s32.totalorder %s24, 1
      %p47 = por %p45, %p46
      %p49 = scmp.ne.s32.totalorder %s32, %s48
      %p50 = scmp.eq.s32.totalorder %s24, 0
      %p51 = por %p49, %p50
      %s53 = sadd.s32 %s52, 1
      %p56 = scmp.eq.s32.totalorder %s18, 1
      %p57 = scmp.ne.s32.totalorder %s52, %s54
      %p58 = scmp.eq.s32.totalorder %s18, 0
      %p59 = por %p57, %p58
      %p60 = scmp.ne.s32.totalorder %s52, %s54
      %p61 = scmp.eq.s32.totalorder %s23, 1
      %p62 = por %p60, %p61
      %p63 = scmp.ne.s32.totalorder %s54, %s55
      %p64 = scmp.eq.s32.totalorder %s23, 0
      %p65 = por %p63, %p64
      %p66 = scmp.ne.s32.totalorder %s54, %s55
      %p67 = scmp.eq.s32.totalorder %s24, 1
      %p68 = por %p66, %p67
      %p70 = scmp.ne.s32.totalorder %s55, %s69
      %p71 = scmp.eq.s32.totalorder %s24, 0
      %p72 = por %p70, %p71
      %s74 = sadd.s32 %s73, 1
      %p77 = scmp.eq.s32.totalorder %s18, 1
      %p78 = scmp.ne.s32.totalorder %s73, %s75
      %p79 = scmp.eq.s32.totalorder %s18, 0
      %p80 = por %p78, %p79
      %p81 = scmp.ne.s32.totalorder %s73, %s75
      %p82 = scmp.eq.s32.totalorder %s23, 1
      %p83 = por %p81, %p82
      %p84 = scmp.ne.s32.totalorder %s75, %s76
      %p85 = scmp.eq.s32.totalorder %s23, 0
      %p86 = por %p84, %p85
      %p87 = scmp.ne.s32.totalorder %s75, %s76
      %p88 = scmp.eq.s32.totalorder %s24, 1
      %p89 = por %p87, %p88
      %p91 = scmp.ne.s32.totalorder %s76, %s90
      %p92 = scmp.eq.s32.totalorder %s24, 0
      %p93 = por %p91, %p92
      %s95 = sadd.s32 %s94, 1
      %p98 = scmp.eq.s32.totalorder %s18, 1
      %p99 = scmp.ne.s32.totalorder %s94, %s96
      %p100 = scmp.eq.s32.totalorder %s18, 0
      %p101 = por %p99, %p100
      %p102 = scmp.ne.s32.totalorder %s94, %s96
      %p103 = scmp.eq.s32.totalorder %s23, 1
      %p104 = por %p102, %p103
      %p105 = scmp.ne.s32.totalorder %s96, %s97
      %p106 = scmp.eq.s32.totalorder %s23, 0
      %p107 = por %p105, %p106
      %p108 = scmp.ne.s32.totalorder %s96, %s97
      %p109 = scmp.eq.s32.totalorder %s24, 1
      %p110 = por %p108, %p109
      %p112 = scmp.ne.s32.totalorder %s97, %s111
      %p113 = scmp.eq.s32.totalorder %s24, 0
      %p114 = por %p112, %p113
      %s116 = sadd.s32 %s115, 1
      %p119 = scmp.eq.s32.totalorder %s18, 1
      %p120 = scmp.ne.s32.totalorder %s115, %s117
      %p121 = scmp.eq.s32.totalorder %s18, 0
      %p122 = por %p120, %p121
      %p123 = scmp.ne.s32.totalorder %s115, %s117
      %p124 = scmp.eq.s32.totalorder %s23, 1
      %p125 = por %p123, %p124
      %p126 = scmp.ne.s32.totalorder %s117, %s118
      %p127 = scmp.eq.s32.totalorder %s23, 0
      %p128 = por %p126, %p127
      %p129 = scmp.ne.s32.totalorder %s117, %s118
      %p130 = scmp.eq.s32.totalorder %s24, 1
      %p131 = por %p129, %p130
      %p133 = scmp.ne.s32.totalorder %s118, %s132
      %p134 = scmp.eq.s32.totalorder %s24, 0
      %p135 = por %p133, %p134
      %s137 = sadd.s32 %s136, 1
      %p140 = scmp.eq.s32.totalorder %s18, 1
      %p141 = scmp.ne.s32.totalorder %s136, %s138
      %p142 = scmp.eq.s32.totalorder %s18, 0
      %p143 = por %p141, %p142
      %p144 = scmp.ne.s32.totalorder %s136, %s138
      %p145 = scmp.eq.s32.totalorder %s23, 1
      %p146 = por %p144, %p145
      %p147 = scmp.ne.s32.totalorder %s138, %s139
      %p148 = scmp.eq.s32.totalorder %s23, 0
      %p149 = por %p147, %p148
      %p150 = scmp.ne.s32.totalorder %s138, %s139
      %p151 = scmp.eq.s32.totalorder %s24, 1
      %p152 = por %p150, %p151
      %p154 = scmp.ne.s32.totalorder %s139, %s153
      %p155 = scmp.eq.s32.totalorder %s24, 0
      %p156 = por %p154, %p155
      %s158 = sadd.s32 %s157, 1
      %p161 = scmp.eq.s32.totalorder %s18, 1
      %p162 = scmp.ne.s32.totalorder %s157, %s159
      %p163 = scmp.eq.s32.totalorder %s18, 0
      %p164 = por %p162, %p163
      %p165 = scmp.ne.s32.totalorder %s157, %s159
      %p166 = scmp.eq.s32.totalorder %s23, 1
      %p167 = por %p165, %p166
      %p168 = scmp.ne.s32.totalorder %s159, %s160
      %p169 = scmp.eq.s32.totalorder %s23, 0
      %p170 = por %p168, %p169
      %p171 = scmp.ne.s32.totalorder %s159, %s160
      %p172 = scmp.eq.s32.totalorder %s24, 1
      %p173 = por %p171, %p172
      %p175 = scmp.ne.s32.totalorder %s160, %s174
      %p176 = scmp.eq.s32.totalorder %s24, 0
      %p177 = por %p175, %p176
      %s179 = sadd.s32 %s178, 1
      %p182 = scmp.eq.s32.totalorder %s18, 1
      %p183 = scmp.ne.s32.totalorder %s178, %s180
      %p184 = scmp.eq.s32.totalorder %s18, 0
      %p185 = por %p183, %p184
      %p186 = scmp.ne.s32.totalorder %s178, %s180
      %p187 = scmp.eq.s32.totalorder %s23, 1
      %p188 = por %p186, %p187
      %p189 = scmp.ne.s32.totalorder %s180, %s181
      %p190 = scmp.eq.s32.totalorder %s23, 0
      %p191 = por %p189, %p190
      %p192 = scmp.ne.s32.totalorder %s180, %s181
      %p193 = scmp.eq.s32.totalorder %s24, 1
      %p194 = por %p192, %p193
      %p196 = scmp.ne.s32.totalorder %s181, %s195
      %p197 = scmp.eq.s32.totalorder %s24, 0
      %p198 = por %p196, %p197
      %s200 = sadd.s32 %s199, 1
      %p203 = scmp.eq.s32.totalorder %s18, 1
      %p204 = scmp.ne.s32.totalorder %s199, %s201
      %p205 = scmp.eq.s32.totalorder %s18, 0
      %p206 = por %p204, %p205
      %p207 = scmp.ne.s32.totalorder %s199, %s201
      %p208 = scmp.eq.s32.totalorder %s23, 1
      %p209 = por %p207, %p208
      %p210 = scmp.ne.s32.totalorder %s201, %s202
      %p211 = scmp.eq.s32.totalorder %s23, 0
      %p212 = por %p210, %p211
      %p213 = scmp.ne.s32.totalorder %s201, %s202
      %p214 = scmp.eq.s32.totalorder %s24, 1
      %p215 = por %p213, %p214
      %p217 = scmp.ne.s32.totalorder %s202, %s216
      %p218 = scmp.eq.s32.totalorder %s24, 0
      %p219 = por %p217, %p218
      %s220 = ssub.s32 %s18, %s25
      %p221 = scmp.eq.s32.totalorder %s220, 0
      %s223 = sadd.s32 %s222, 1
      %s224 = scalar_select %p221, %s222, %s223
      %p227 = pneg %p221
      %p228 = scmp.eq.s32.totalorder %s18, 1
      %p229 = por %p227, %p228
      %p230 = scmp.ne.s32.totalorder %s222, %s225
      %p231 = scmp.eq.s32.totalorder %s18, 0
      %p232 = por %p230, %p231
      %p233 = scmp.ne.s32.totalorder %s222, %s225
      %p234 = scmp.eq.s32.totalorder %s23, 1
      %p235 = por %p233, %p234
      %p236 = scmp.ne.s32.totalorder %s225, %s226
      %p237 = scmp.eq.s32.totalorder %s23, 0
      %p238 = por %p236, %p237
      %p239 = scmp.ne.s32.totalorder %s225, %s226
      %p240 = scmp.eq.s32.totalorder %s24, 1
      %p241 = por %p239, %p240
      %p243 = scmp.ne.s32.totalorder %s226, %s242
      %p244 = scmp.eq.s32.totalorder %s24, 0
      %p245 = por %p243, %p244
      %p246 = scmp.le.s32.totalorder 1, %s18
      %p247 = scmp.lt.s32.totalorder %s18, 3
      %p248 = pnand %p246, %p247
      %p249 = pneg %p248
      // Predicated region
      $region9: #{tpu_custom_call.1} parent=5 // pred_check
        _
      $region10: #{tpu_custom_call.1} parent=5 // pred_check_branch
        %251 = sbr.rel (%p248) target = $region12
      $region11: #{tpu_custom_call.1} parent=5 // pred_region
        %s252 = ssub.s32 %s18, 1
        // Predicated region
        $region13: #{tpu_custom_call.1} parent=11 // pred_check
          %p253 = pneg %p65
        $region14: #{tpu_custom_call.1} parent=11 // pred_check_branch
          %255 = sbr.rel (%p253) target = $region16
        $region15: #{tpu_custom_call.1} parent=11 // pred_region
          _
        $region16: #{tpu_custom_call.1} parent=11 // pred_fallthru
          _
        // Predicated region
        $region17: #{tpu_custom_call.1} parent=11 // pred_check
          %p256 = pneg %p86
        $region18: #{tpu_custom_call.1} parent=11 // pred_check_branch
          %258 = sbr.rel (%p256) target = $region20
        $region19: #{tpu_custom_call.1} parent=11 // pred_region
          _
        $region20: #{tpu_custom_call.1} parent=11 // pred_fallthru
          _
        // Predicated region
        $region21: #{tpu_custom_call.1} parent=11 // pred_check
          %p259 = pneg %p107
        $region22: #{tpu_custom_call.1} parent=11 // pred_check_branch
          %261 = sbr.rel (%p259) target = $region24
        $region23: #{tpu_custom_call.1} parent=11 // pred_region
          _
        $region24: #{tpu_custom_call.1} parent=11 // pred_fallthru
          _
        // Predicated region
        $region25: #{tpu_custom_call.1} parent=11 // pred_check
          %p262 = pneg %p128
        $region26: #{tpu_custom_call.1} parent=11 // pred_check_branch
          %264 = sbr.rel (%p262) target = $region28
        $region27: #{tpu_custom_call.1} parent=11 // pred_region
          _
        $region28: #{tpu_custom_call.1} parent=11 // pred_fallthru
          _
        // Predicated region
        $region29: #{tpu_custom_call.1} parent=11 // pred_check
          %p265 = pneg %p149
        $region30: #{tpu_custom_call.1} parent=11 // pred_check_branch
          %267 = sbr.rel (%p265) target = $region32
        $region31: #{tpu_custom_call.1} parent=11 // pred_region
          _
        $region32: #{tpu_custom_call.1} parent=11 // pred_fallthru
          _
        // Predicated region
        $region33: #{tpu_custom_call.1} parent=11 // pred_check
          %p268 = pneg %p170
        $region34: #{tpu_custom_call.1} parent=11 // pred_check_branch
          %270 = sbr.rel (%p268) target = $region36
        $region35: #{tpu_custom_call.1} parent=11 // pred_region
          _
        $region36: #{tpu_custom_call.1} parent=11 // pred_fallthru
          _
        // Predicated region
        $region37: #{tpu_custom_call.1} parent=11 // pred_check
          %p271 = pneg %p191
        $region38: #{tpu_custom_call.1} parent=11 // pred_check_branch
          %273 = sbr.rel (%p271) target = $region40
        $region39: #{tpu_custom_call.1} parent=11 // pred_region
          _
        $region40: #{tpu_custom_call.1} parent=11 // pred_fallthru
          _
        // Predicated region
        $region41: #{tpu_custom_call.1} parent=11 // pred_check
          %p274 = pneg %p212
        $region42: #{tpu_custom_call.1} parent=11 // pred_check_branch
          %276 = sbr.rel (%p274) target = $region44
        $region43: #{tpu_custom_call.1} parent=11 // pred_region
          _
        $region44: #{tpu_custom_call.1} parent=11 // pred_fallthru
          _
      $region12: #{tpu_custom_call.1} parent=5 // pred_fallthru
        _
      %p277 = scmp.lt.s32.totalorder %s18, 2
      // Predicated region
      $region45: #{tpu_custom_call.1} parent=5 // pred_check
        %p278 = pneg %p277
      $region46: #{tpu_custom_call.1} parent=5 // pred_check_branch
        %280 = sbr.rel (%p278) target = $region48
      $region47: #{tpu_custom_call.1} parent=5 // pred_region
        // Predicated region
        $region49: #{tpu_custom_call.1} parent=47 // pred_check
          %p281 = pneg %p38
        $region50: #{tpu_custom_call.1} parent=47 // pred_check_branch
          %283 = sbr.rel (%p281) target = $region52
        $region51: #{tpu_custom_call.1} parent=47 // pred_region
          %p284 = scmp.lt.s32.totalorder %s18, 1
          %s285 = scalar_select %p284, %s18, 1
          %s286 = smul.addr %s285, 2
          %s287 = smul.addr %s286, 4
          %s288 = scalar_lea.vmem %s0, %s287
        $region52: #{tpu_custom_call.1} parent=47 // pred_fallthru
          _
      $region48: #{tpu_custom_call.1} parent=5 // pred_fallthru
        _
      %p289 = scmp.le.s32.totalorder 1, %s18
      %p290 = scmp.lt.s32.totalorder %s18, 3
      %p291 = pnand %p289, %p290
      %p292 = pneg %p291
      // Predicated region
      $region53: #{tpu_custom_call.1} parent=5 // pred_check
        _
      $region54: #{tpu_custom_call.1} parent=5 // pred_check_branch
        %294 = sbr.rel (%p291) target = $region56
      $region55: #{tpu_custom_call.1} parent=5 // pred_region
        %s295 = ssub.s32 %s18, 1
        %p296 = scmp.lt.s32.totalorder %s23, 1
        %s297 = scalar_select %p296, %s23, 1
        %s298 = smul.addr %s297, 2
        %s299 = smul.addr %s298, 4
        %s300 = scalar_lea.vmem %s0, %s299
        %p301 = pneg %p44
        %p302 = pneg %p41
        %p303 = pneg %p65
        %p304 = pneg %p62
        %p305 = pneg %p86
        %p306 = pneg %p83
        %p307 = pneg %p107
        %p308 = pneg %p104
        %p309 = pneg %p128
        %p310 = pneg %p125
        %p311 = pneg %p149
        %p312 = pneg %p146
        %p313 = pneg %p170
        %p314 = pneg %p167
        %p315 = pneg %p191
        %p316 = pneg %p188
        %p317 = pneg %p212
        %p318 = pneg %p209
        %p319 = pneg %p238
        %p320 = pneg %p235
        %s321 = sand.u32 %s225, 1
        %s322 = scalar_lea.sflag [#allocation4], %s321
        %s323 = sand.u32 %s225, 1
        %s324 = smul.addr %s323, 8
        %s325 = scalar_lea.vmem [#allocation3], %s324
        %p326 = scmp.lt.s32.totalorder %s23, 1
        %s327 = scalar_select %p326, %s23, 1
        %s328 = smul.addr %s327, 2
        %s329 = smul.addr %s328, 4
        %s330 = scalar_lea.vmem %s0, %s329
        %v332 = vld [vmem:[%s330] sm:$0xff]
        %v333 = vld [vmem:[%s5] sm:$0xf]
        %335 = vset.pattern.permute.xlu0 0
        %336 = vperm.xlu0 %335, %v333
        %v337 = vpop.permute.xlu0 %336
        %v339 = vunpack.c.l.s4 839922192
        %v340 = vunpack.c.0.s8 %v339
        %v341 = vlaneseq
        %v342 = vshrl.u32 %v341, 7
        %v343 = vsub.s32 %v340, %v342
        %v344 = vrot.slane %v337, %v343
        %v346 = vadd.f32 %v332, %v344
        %v347 = vsub.f32 0.0, %v346
        %v348 = vmul.f32 %v347, 1.442695
        %v349 = vpow.pop %v348
        %v350 = vadd.f32 %v349, 1.0
        %v351 = vrcp.pop %v350
        %v352 = vmul.f32 %v346, %v351
        %v353 = vld [vmem:[%s6] sm:$0xf]
        %355 = vset.pattern.permute.xlu0 0
        %356 = vperm.xlu0 %355, %v353
        %v357 = vpop.permute.xlu0 %356
        %v359 = vunpack.c.l.s4 839922192
        %v360 = vunpack.c.0.s8 %v359
        %v361 = vlaneseq
        %v362 = vshrl.u32 %v361, 7
        %v363 = vsub.s32 %v360, %v362
        %v364 = vrot.slane %v357, %v363
        %v366 = vadd.f32 %v352, %v364
        %v368 = vcombine.high %v366, %v366
        %v370 = vpack.c.bf16 %v366, %v366
        %v371 = vpack.c.bf16 %v368, %v368
        %373 = vrot.lane.b32.xlu0 %v371, 17
        %v374 = vpop.permute.xlu0 %373
        %376 = vrot.lane.b32.xlu0 %v370, 17
        %v377 = vpop.permute.xlu0 %376
        %vm378 = vcmask 138240
        %v379 = vsel %vm378, %v377, %v374
        %vm381 = vcmask 138240
        %v384 = vsel %vm381, %v374, %v377
        %v386 = vld [vmem:[%s4] sm:$0x3]
        %v389 = vunpack.c.l.s4 1966171168
        %v390 = vunpack.c.0.s8 %v389
        %v391 = vlaneseq
        %v392 = vshrl.u32 %v391, 7
        %v393 = vsub.s32 %v390, %v392
        %v394 = vrot.slane %v386, %v393
        %v395 = vcombine.high %v394, %v394
        %v397 = vunpack.c.l.s4 1966171168
        %v398 = vunpack.c.0.s8 %v397
        %v399 = vlaneseq
        %v400 = vshrl.u32 %v399, 7
        %v401 = vsub.s32 %v398, %v400
        %v402 = vrot.slane %v394, %v401
        %v404 = vunpack.c.l.s4 1966171168
        %v405 = vunpack.c.0.s8 %v404
        %v406 = vlaneseq
        %v407 = vshrl.u32 %v406, 7
        %v408 = vsub.s32 %v405, %v407
        %v409 = vrot.slane %v395, %v408
        %v411 = vpack.i.b16 %v402, %v402
        %v413 = vlaneseq
        %v414 = vshrl.u32 %v413, 7
        %v415 = vsub.s32 0, %v414
        %v416 = vrot.slane %v411, %v415
        %v418 = vpack.i.b16 %v409, %v409
        %v420 = vlaneseq
        %v421 = vshrl.u32 %v420, 7
        %v422 = vsub.s32 0, %v421
        %v423 = vrot.slane %v418, %v422
        %v424 = vmul.bf16 %v384, %v416
        %v425 = vmul.bf16 %v379, %v423
        %v428 = vunpack.c.l.b16 %v424
        %v429 = vunpack.c.l.b16 %v425
        %v430 = vpack.c.b16 %v429, %v428
        %432 = vst [vmem:[#allocation2] sm:$0x33] %v430
        %433 = vrot.lane.b32.xlu0 %v371, 16
        %v434 = vpop.permute.xlu0 %433
        %435 = vrot.lane.b32.xlu0 %v370, 16
        %v436 = vpop.permute.xlu0 %435
        %vm437 = vcmask 130048
        %v438 = vsel %vm437, %v436, %v434
        %vm440 = vcmask 130048
        %v443 = vsel %vm440, %v434, %v436
        %s445 = scalar_lea.vmem %s4, 2
        %v446 = vld [vmem:[%s445] sm:$0x3]
        %v449 = vunpack.c.l.s4 1966171168
        %v450 = vunpack.c.0.s8 %v449
        %v451 = vlaneseq
        %v452 = vshrl.u32 %v451, 7
        %v453 = vsub.s32 %v450, %v452
        %v454 = vrot.slane %v446, %v453
        %v455 = vcombine.high %v454, %v454
        %v457 = vunpack.c.l.s4 1966171168
        %v458 = vunpack.c.0.s8 %v457
        %v459 = vlaneseq
        %v460 = vshrl.u32 %v459, 7
        %v461 = vsub.s32 %v458, %v460
        %v462 = vrot.slane %v454, %v461
        %v464 = vunpack.c.l.s4 1966171168
        %v465 = vunpack.c.0.s8 %v464
        %v466 = vlaneseq
        %v467 = vshrl.u32 %v466, 7
        %v468 = vsub.s32 %v465, %v467
        %v469 = vrot.slane %v455, %v468
        %v471 = vpack.i.b16 %v462, %v462
        %v473 = vlaneseq
        %v474 = vshrl.u32 %v473, 7
        %v475 = vsub.s32 0, %v474
        %v476 = vrot.slane %v471, %v475
        %v478 = vpack.i.b16 %v469, %v469
        %v480 = vlaneseq
        %v481 = vshrl.u32 %v480, 7
        %v482 = vsub.s32 0, %v481
        %v483 = vrot.slane %v478, %v482
        %v484 = vmul.bf16 %v443, %v476
        %v485 = vmul.bf16 %v438, %v483
        %v488 = vunpack.c.l.b16 %v484
        %v489 = vunpack.c.l.b16 %v485
        %v490 = vpack.c.b16 %v489, %v488
        %v491 = vrot.slane %v490, 6
        %493 = vst [vmem:[#allocation2] sm:$0xcc] %v491
        %494 = vrot.lane.b32.xlu0 %v371, 15
        %v495 = vpop.permute.xlu0 %494
        %496 = vrot.lane.b32.xlu0 %v370, 15
        %v497 = vpop.permute.xlu0 %496
        %vm498 = vcmask 121856
        %v499 = vsel %vm498, %v497, %v495
        %vm501 = vcmask 121856
        %v504 = vsel %vm501, %v495, %v497
        %s506 = scalar_lea.vmem %s4, 4
        %v507 = vld [vmem:[%s506] sm:$0x3]
        %v510 = vunpack.c.l.s4 1966171168
        %v511 = vunpack.c.0.s8 %v510
        %v512 = vlaneseq
        %v513 = vshrl.u32 %v512, 7
        %v514 = vsub.s32 %v511, %v513
        %v515 = vrot.slane %v507, %v514
        %v516 = vcombine.high %v515, %v515
        %v518 = vunpack.c.l.s4 1966171168
        %v519 = vunpack.c.0.s8 %v518
        %v520 = vlaneseq
        %v521 = vshrl.u32 %v520, 7
        %v522 = vsub.s32 %v519, %v521
        %v523 = vrot.slane %v515, %v522
        %v525 = vunpack.c.l.s4 1966171168
        %v526 = vunpack.c.0.s8 %v525
        %v527 = vlaneseq
        %v528 = vshrl.u32 %v527, 7
        %v529 = vsub.s32 %v526, %v528
        %v530 = vrot.slane %v516, %v529
        %v532 = vpack.i.b16 %v523, %v523
        %v534 = vlaneseq
        %v535 = vshrl.u32 %v534, 7
        %v536 = vsub.s32 0, %v535
        %v537 = vrot.slane %v532, %v536
        %v539 = vpack.i.b16 %v530, %v530
        %v541 = vlaneseq
        %v542 = vshrl.u32 %v541, 7
        %v543 = vsub.s32 0, %v542
        %v544 = vrot.slane %v539, %v543
        %v545 = vmul.bf16 %v504, %v537
        %v546 = vmul.bf16 %v499, %v544
        %v549 = vunpack.c.l.b16 %v545
        %v550 = vunpack.c.l.b16 %v546
        %v551 = vpack.c.b16 %v550, %v549
        %553 = vst [vmem:[#allocation2 + $0x8] sm:$0x33] %v551
        %554 = vrot.lane.b32.xlu0 %v371, 1
        %v555 = vpop.permute.xlu0 %554
        %556 = vrot.lane.b32.xlu0 %v370, 1
        %v557 = vpop.permute.xlu0 %556
        %vm558 = vcmask 7168
        %v559 = vsel %vm558, %v557, %v555
        %vm561 = vcmask 7168
        %v564 = vsel %vm561, %v555, %v557
        %s566 = scalar_lea.vmem %s4, 6
        %v567 = vld [vmem:[%s566] sm:$0x3]
        %v570 = vunpack.c.l.s4 1966171168
        %v571 = vunpack.c.0.s8 %v570
        %v572 = vlaneseq
        %v573 = vshrl.u32 %v572, 7
        %v574 = vsub.s32 %v571, %v573
        %v575 = vrot.slane %v567, %v574
        %v576 = vcombine.high %v575, %v575
        %v578 = vunpack.c.l.s4 1966171168
        %v579 = vunpack.c.0.s8 %v578
        %v580 = vlaneseq
        %v581 = vshrl.u32 %v580, 7
        %v582 = vsub.s32 %v579, %v581
        %v583 = vrot.slane %v575, %v582
        %v585 = vunpack.c.l.s4 1966171168
        %v586 = vunpack.c.0.s8 %v585
        %v587 = vlaneseq
        %v588 = vshrl.u32 %v587, 7
        %v589 = vsub.s32 %v586, %v588
        %v590 = vrot.slane %v576, %v589
        %v592 = vpack.i.b16 %v583, %v583
        %v594 = vlaneseq
        %v595 = vshrl.u32 %v594, 7
        %v596 = vsub.s32 0, %v595
        %v597 = vrot.slane %v592, %v596
        %v599 = vpack.i.b16 %v590, %v590
        %v601 = vlaneseq
        %v602 = vshrl.u32 %v601, 7
        %v603 = vsub.s32 0, %v602
        %v604 = vrot.slane %v599, %v603
        %v605 = vmul.bf16 %v564, %v597
        %v606 = vmul.bf16 %v559, %v604
        %v609 = vunpack.c.l.b16 %v605
        %v610 = vunpack.c.l.b16 %v606
        %v611 = vpack.c.b16 %v610, %v609
        %v612 = vrot.slane %v611, 6
        %614 = vst [vmem:[#allocation2 + $0x8] sm:$0xcc] %v612
        %v615 = vunpack.c.l.b16 %v370
        %v616 = vunpack.c.l.b16 %v371
        %v617 = vpack.c.b16 %v616, %v615
        %619 = vst [vmem:[#allocation2 + $0x10] sm:$0x33] %v617
        %620 = vrot.lane.b32.xlu0 %v370, 127
        %v621 = vpop.permute.xlu0 %620
        %622 = vrot.lane.b32.xlu0 %v371, 127
        %v623 = vpop.permute.xlu0 %622
        %vm624 = vcmask 1039360
        %v625 = vsel %vm624, %v621, %v623
        %vm627 = vcmask 1039360
        %v630 = vsel %vm627, %v623, %v621
        %s632 = scalar_lea.vmem %s4, 10
        %v633 = vld [vmem:[%s632] sm:$0x3]
        %v636 = vunpack.c.l.s4 1966171168
        %v637 = vunpack.c.0.s8 %v636
        %v638 = vlaneseq
        %v639 = vshrl.u32 %v638, 7
        %v640 = vsub.s32 %v637, %v639
        %v641 = vrot.slane %v633, %v640
        %v642 = vcombine.high %v641, %v641
        %v644 = vunpack.c.l.s4 1966171168
        %v645 = vunpack.c.0.s8 %v644
        %v646 = vlaneseq
        %v647 = vshrl.u32 %v646, 7
        %v648 = vsub.s32 %v645, %v647
        %v649 = vrot.slane %v641, %v648
        %v651 = vunpack.c.l.s4 1966171168
        %v652 = vunpack.c.0.s8 %v651
        %v653 = vlaneseq
        %v654 = vshrl.u32 %v653, 7
        %v655 = vsub.s32 %v652, %v654
        %v656 = vrot.slane %v642, %v655
        %v658 = vpack.i.b16 %v649, %v649
        %v660 = vlaneseq
        %v661 = vshrl.u32 %v660, 7
        %v662 = vsub.s32 0, %v661
        %v663 = vrot.slane %v658, %v662
        %v665 = vpack.i.b16 %v656, %v656
        %v667 = vlaneseq
        %v668 = vshrl.u32 %v667, 7
        %v669 = vsub.s32 0, %v668
        %v670 = vrot.slane %v665, %v669
        %v671 = vmul.bf16 %v625, %v663
        %v672 = vmul.bf16 %v630, %v670
        %v675 = vunpack.c.l.b16 %v671
        %v676 = vunpack.c.l.b16 %v672
        %v677 = vpack.c.b16 %v676, %v675
        %v678 = vrot.slane %v677, 6
        %680 = vst [vmem:[#allocation2 + $0x10] sm:$0xcc] %v678
        %681 = vrot.lane.b32.xlu0 %v370, 113
        %v682 = vpop.permute.xlu0 %681
        %683 = vrot.lane.b32.xlu0 %v371, 113
        %v684 = vpop.permute.xlu0 %683
        %vm685 = vcmask 924672
        %v686 = vsel %vm685, %v682, %v684
        %vm688 = vcmask 924672
        %v691 = vsel %vm688, %v684, %v682
        %s693 = scalar_lea.vmem %s4, 12
        %v694 = vld [vmem:[%s693] sm:$0x3]
        %v697 = vunpack.c.l.s4 1966171168
        %v698 = vunpack.c.0.s8 %v697
        %v699 = vlaneseq
        %v700 = vshrl.u32 %v699, 7
        %v701 = vsub.s32 %v698, %v700
        %v702 = vrot.slane %v694, %v701
        %v703 = vcombine.high %v702, %v702
        %v705 = vunpack.c.l.s4 1966171168
        %v706 = vunpack.c.0.s8 %v705
        %v707 = vlaneseq
        %v708 = vshrl.u32 %v707, 7
        %v709 = vsub.s32 %v706, %v708
        %v710 = vrot.slane %v702, %v709
        %v712 = vunpack.c.l.s4 1966171168
        %v713 = vunpack.c.0.s8 %v712
        %v714 = vlaneseq
        %v715 = vshrl.u32 %v714, 7
        %v716 = vsub.s32 %v713, %v715
        %v717 = vrot.slane %v703, %v716
        %v719 = vpack.i.b16 %v710, %v710
        %v721 = vlaneseq
        %v722 = vshrl.u32 %v721, 7
        %v723 = vsub.s32 0, %v722
        %v724 = vrot.slane %v719, %v723
        %v726 = vpack.i.b16 %v717, %v717
        %v728 = vlaneseq
        %v729 = vshrl.u32 %v728, 7
        %v730 = vsub.s32 0, %v729
        %v731 = vrot.slane %v726, %v730
        %v732 = vmul.bf16 %v686, %v724
        %v733 = vmul.bf16 %v691, %v731
        %v736 = vunpack.c.l.b16 %v732
        %v737 = vunpack.c.l.b16 %v733
        %v738 = vpack.c.b16 %v737, %v736
        %740 = vst [vmem:[#allocation2 + $0x18] sm:$0x33] %v738
        %741 = vrot.lane.b32.xlu0 %v370, 112
        %v742 = vpop.permute.xlu0 %741
        %743 = vrot.lane.b32.xlu0 %v371, 112
        %v744 = vpop.permute.xlu0 %743
        %vm745 = vcmask 916480
        %v746 = vsel %vm745, %v742, %v744
        %vm748 = vcmask 916480
        %v751 = vsel %vm748, %v744, %v742
        %s753 = scalar_lea.vmem %s4, 14
        %v754 = vld [vmem:[%s753] sm:$0x3]
        %v757 = vunpack.c.l.s4 1966171168
        %v758 = vunpack.c.0.s8 %v757
        %v759 = vlaneseq
        %v760 = vshrl.u32 %v759, 7
        %v761 = vsub.s32 %v758, %v760
        %v762 = vrot.slane %v754, %v761
        %v763 = vcombine.high %v762, %v762
        %v765 = vunpack.c.l.s4 1966171168
        %v766 = vunpack.c.0.s8 %v765
        %v767 = vlaneseq
        %v768 = vshrl.u32 %v767, 7
        %v769 = vsub.s32 %v766, %v768
        %v770 = vrot.slane %v762, %v769
        %v772 = vunpack.c.l.s4 1966171168
        %v773 = vunpack.c.0.s8 %v772
        %v774 = vlaneseq
        %v775 = vshrl.u32 %v774, 7
        %v776 = vsub.s32 %v773, %v775
        %v777 = vrot.slane %v763, %v776
        %v779 = vpack.i.b16 %v770, %v770
        %v781 = vlaneseq
        %v782 = vshrl.u32 %v781, 7
        %v783 = vsub.s32 0, %v782
        %v784 = vrot.slane %v779, %v783
        %v786 = vpack.i.b16 %v777, %v777
        %v788 = vlaneseq
        %v789 = vshrl.u32 %v788, 7
        %v790 = vsub.s32 0, %v789
        %v791 = vrot.slane %v786, %v790
        %v792 = vmul.bf16 %v746, %v784
        %v793 = vmul.bf16 %v751, %v791
        %v796 = vunpack.c.l.b16 %v792
        %v797 = vunpack.c.l.b16 %v793
        %v798 = vpack.c.b16 %v797, %v796
        %v799 = vrot.slane %v798, 6
        %801 = vst [vmem:[#allocation2 + $0x18] sm:$0xcc] %v799
        %802 = vrot.lane.b32.xlu0 %v370, 111
        %v803 = vpop.permute.xlu0 %802
        %804 = vrot.lane.b32.xlu0 %v371, 111
        %v805 = vpop.permute.xlu0 %804
        %vm806 = vcmask 908288
        %v807 = vsel %vm806, %v803, %v805
        %vm809 = vcmask 908288
        %v812 = vsel %vm809, %v805, %v803
        %s814 = scalar_lea.vmem %s4, 16
        %v815 = vld [vmem:[%s814] sm:$0x3]
        %v818 = vunpack.c.l.s4 1966171168
        %v819 = vunpack.c.0.s8 %v818
        %v820 = vlaneseq
        %v821 = vshrl.u32 %v820, 7
        %v822 = vsub.s32 %v819, %v821
        %v823 = vrot.slane %v815, %v822
        %v824 = vcombine.high %v823, %v823
        %v826 = vunpack.c.l.s4 1966171168
        %v827 = vunpack.c.0.s8 %v826
        %v828 = vlaneseq
        %v829 = vshrl.u32 %v828, 7
        %v830 = vsub.s32 %v827, %v829
        %v831 = vrot.slane %v823, %v830
        %v833 = vunpack.c.l.s4 1966171168
        %v834 = vunpack.c.0.s8 %v833
        %v835 = vlaneseq
        %v836 = vshrl.u32 %v835, 7
        %v837 = vsub.s32 %v834, %v836
        %v838 = vrot.slane %v824, %v837
        %v840 = vpack.i.b16 %v831, %v831
        %v842 = vlaneseq
        %v843 = vshrl.u32 %v842, 7
        %v844 = vsub.s32 0, %v843
        %v845 = vrot.slane %v840, %v844
        %v847 = vpack.i.b16 %v838, %v838
        %v849 = vlaneseq
        %v850 = vshrl.u32 %v849, 7
        %v851 = vsub.s32 0, %v850
        %v852 = vrot.slane %v847, %v851
        %v853 = vmul.bf16 %v807, %v845
        %v854 = vmul.bf16 %v812, %v852
        %v857 = vunpack.c.l.b16 %v853
        %v858 = vunpack.c.l.b16 %v854
        %v859 = vpack.c.b16 %v858, %v857
        %861 = vst [vmem:[#allocation2 + $0x20] sm:$0x33] %v859
        %v862 = vld [vmem:[#allocation2] sm:$0xff]
        %v863 = vld [vmem:[#allocation2 + $0x8] sm:$0xff]
        %v864 = vld [vmem:[#allocation2 + $0x10] sm:$0xff]
        %v865 = vld [vmem:[#allocation2 + $0x18] sm:$0xff]
        %v866 = vld [vmem:[#allocation2 + $0x20] sm:$0x33]
        %v867 = vld [vmem:[%s1] sm:$0xf]
        %v868 = vld [vmem:[%s2] sm:$0xff]
        %870 = vset.pattern.permute.xlu0 0
        %871 = vperm.xlu0 %870, %v868
        %v872 = vpop.permute.xlu0 %871
        %v879 = vunpack.c.l.b16 %v862
        %v880 = vunpack.c.h.b16 %v862
        %v881 = vunpack.c.l.b16 %v863
        %v882 = vunpack.c.h.b16 %v863
        %v883 = vunpack.c.l.b16 %v864
        %v884 = vunpack.c.h.b16 %v864
        %v885 = vunpack.c.l.b16 %v865
        %v886 = vunpack.c.h.b16 %v865
        %v887 = vunpack.c.l.b16 %v866
        %v888 = vunpack.c.h.b16 %v866
        %v889 = vpack.c.b16 %v881, %v879
        %v890 = vpack.c.b16 %v882, %v880
        %v891 = vpack.c.b16 %v885, %v883
        %v892 = vpack.c.b16 %v886, %v884
        %v893 = vpack.c.b16 %v887, %v887
        %v894 = vpack.c.b16 %v888, %v888
        %vm899 = vcmask 293888
        %v901 = vsel %vm899, %v867, 0
        %vm903 = vcmask 1041408
        %v905 = vsel %vm903, %v893, 0
        %v908 = vsel %vm903, %v894, 0
        %910 = vmatprep.subr.bf16.mxu0 0
        %911 = vmatpush1.bf16.msra.mxu0 0
        %912 = vmatprep.subr.bf16.mxu0 0
        %913 = vmatpush1.bf16.msra.mxu0 0
        %914 = vmatprep.subr.bf16.mxu0 0
        %915 = vmatpush1.bf16.msra.mxu0 0
        %916 = vmatprep.subr.bf16.mxu0 0
        %917 = vmatpush1.bf16.msra.mxu0 0
        %918 = vmatprep.subr.bf16.mxu0 0
        %919 = vmatpush1.bf16.msra.mxu0 0
        %920 = vmatprep.subr.bf16.mxu0 %v908
        %921 = vmatpush1.bf16.msra.mxu0 %v905
        %922 = vmatprep.subr.bf16.mxu0 %v892
        %923 = vmatpush1.bf16.msra.mxu0 %v891
        %924 = vmatprep.subr.bf16.mxu0 %v890
        %925 = vmatpush1.bf16.msra.mxu0 %v889
        %926 = vmatprep.subr.bf16.mxu0 0
        %927 = vmatpush2.bf16.msra.mxu0 0
        %928 = vmatprep.subr.bf16.mxu0 0
        %929 = vmatpush2.bf16.msra.mxu0 0
        %930 = vmatprep.subr.bf16.mxu0 0
        %931 = vmatpush2.bf16.msra.mxu0 0
        %932 = vmatprep.subr.bf16.mxu0 0
        %933 = vmatpush2.bf16.msra.mxu0 0
        %934 = vmatprep.subr.bf16.mxu0 0
        %935 = vmatpush2.bf16.msra.mxu0 0
        %936 = vmatprep.subr.bf16.mxu0 0
        %937 = vmatpush2.bf16.msra.mxu0 0
        %938 = vmatprep.subr.bf16.mxu0 0
        %939 = vmatpush2.bf16.msra.mxu0 0
        %940 = vmatprep.subr.bf16.mxu0 0
        %941 = vmatpush2.bf16.msra.mxu0 0
        %942 = vmatprep.mubr.bf16.mxu0 0
        %943 = vmatmul.mubr.bf16.gmra.mxu0 %v901
        %v944 = vpop.f32.mrf.mxu0
        %v945 = vadd.f32 %v872, %v944
        %v946 = vpop.f32.mrf.mxu0
        %v947 = vadd.f32 %v872, %v946
        %v948 = vpop.f32.mrf.mxu0
        %v949 = vpop.f32.mrf.mxu0
        %950 = vdwg.mxu0
        %v951 = vsub.f32 0.0, %v945
        %v952 = vsub.f32 0.0, %v947
        %v953 = vmul.f32 %v951, 1.442695
        %v954 = vpow.pop %v953
        %v955 = vmul.f32 %v952, 1.442695
        %v956 = vpow.pop %v955
        %v957 = vadd.f32 %v954, 1.0
        %v958 = vadd.f32 %v956, 1.0
        %v959 = vrcp.pop %v957
        %v960 = vrcp.pop %v958
        %v961 = vmul.f32 %v945, %v959
        %v962 = vmul.f32 %v947, %v960
        %v963 = vpack.c.bf16 %v961, %v961
        %v964 = vpack.c.bf16 %v962, %v962
        %v965 = vld [vmem:[%s3] sm:$0x3]
        %v966 = vld [vmem:[%s7] sm:$0xf]
        %968 = vset.pattern.permute.xlu0 0
        %969 = vperm.xlu0 %968, %v966
        %v970 = vpop.permute.xlu0 %969
        %vm972 = vcmask 64512
        %v974 = vsel %vm972, %v965, 0
        %vm976 = vcmask 1043456
        %v978 = vsel %vm976, %v963, 0
        %v981 = vsel %vm976, %v964, 0
        %983 = vmatprep.subr.bf16.mxu0 0
        %984 = vmatpush1.bf16.msra.mxu0 0
        %985 = vmatprep.subr.bf16.mxu0 0
        %986 = vmatpush1.bf16.msra.mxu0 0
        %987 = vmatprep.subr.bf16.mxu0 0
        %988 = vmatpush1.bf16.msra.mxu0 0
        %989 = vmatprep.subr.bf16.mxu0 0
        %990 = vmatpush1.bf16.msra.mxu0 0
        %991 = vmatprep.subr.bf16.mxu0 0
        %992 = vmatpush1.bf16.msra.mxu0 0
        %993 = vmatprep.subr.bf16.mxu0 0
        %994 = vmatpush1.bf16.msra.mxu0 0
        %995 = vmatprep.subr.bf16.mxu0 0
        %996 = vmatpush1.bf16.msra.mxu0 0
        %997 = vmatprep.subr.bf16.mxu0 %v981
        %998 = vmatpush1.bf16.msra.mxu0 %v978
        %999 = vmatprep.subr.bf16.mxu0 0
        %1000 = vmatpush2.bf16.msra.mxu0 0
        %1001 = vmatprep.subr.bf16.mxu0 0
        %1002 = vmatpush2.bf16.msra.mxu0 0
        %1003 = vmatprep.subr.bf16.mxu0 0
        %1004 = vmatpush2.bf16.msra.mxu0 0
        %1005 = vmatprep.subr.bf16.mxu0 0
        %1006 = vmatpush2.bf16.msra.mxu0 0
        %1007 = vmatprep.subr.bf16.mxu0 0
        %1008 = vmatpush2.bf16.msra.mxu0 0
        %1009 = vmatprep.subr.bf16.mxu0 0
        %1010 = vmatpush2.bf16.msra.mxu0 0
        %1011 = vmatprep.subr.bf16.mxu0 0
        %1012 = vmatpush2.bf16.msra.mxu0 0
        %1013 = vmatprep.subr.bf16.mxu0 0
        %1014 = vmatpush2.bf16.msra.mxu0 0
        %1015 = vmatprep.mubr.bf16.mxu0 0
        %1016 = vmatmul.mubr.bf16.gmra.mxu0 %v974
        %v1017 = vpop.f32.mrf.mxu0
        %v1018 = vadd.f32 %v970, %v1017
        %v1019 = vpop.f32.mrf.mxu0
        %v1020 = vadd.f32 %v970, %v1019
        %v1021 = vpop.f32.mrf.mxu0
        %v1022 = vpop.f32.mrf.mxu0
        %1023 = vdwg.mxu0
        %v1024 = vld [vmem:[%s330] sm:$0xff]
        %v1025 = vld [vmem:[%s8] sm:$0xf]
        %1027 = vset.pattern.permute.xlu0 0
        %1028 = vperm.xlu0 %1027, %v1025
        %v1029 = vpop.permute.xlu0 %1028
        %v1031 = vunpack.c.l.s4 839922192
        %v1032 = vunpack.c.0.s8 %v1031
        %v1033 = vlaneseq
        %v1034 = vshrl.u32 %v1033, 7
        %v1035 = vsub.s32 %v1032, %v1034
        %v1036 = vrot.slane %v1029, %v1035
        %v1038 = vmul.f32 %v1024, %v1036
        %v1041 = vcombine.low %v1018, %v1020
        %v1043 = vadd.f32 %v1038, %v1041
        %1044 = vst [vmem:[%s325] sm:$0xff] %v1043
        %s1045 = sand.u32 %s225, 1
        %s1046 = scalar_lea.sflag [#allocation4], %s1045
        %s1047 = sand.u32 %s225, 1
        %s1048 = smul.addr %s1047, 8
        %s1049 = scalar_lea.vmem [#allocation3], %s1048
        // Predicated region
        $region57: #{tpu_custom_call.1} parent=55 // pred_check
          %p1050 = pneg %p235
        $region58: #{tpu_custom_call.1} parent=55 // pred_check_branch
          %1052 = sbr.rel (%p1050) target = $region60
        $region59: #{tpu_custom_call.1} parent=55 // pred_region
          %s1054 = ssub.s32 128, 128
          %1055 = vsyncadd %s1046, %s1054
          %s1056 = smul.addr %s23, 2
          %s1057 = smul.addr %s1056, 64
          %s1058 = scalar_lea.hbm %s9, %s1057
          %s1060 = sshll.u32 %s1049, 4
          %s1061 = int_to_ptr.vmem [resolvable:$true] %s1060
          %1063 = dma.vmem_to_hbm [thread:$0]  %s1061, 128, %s1058, %s1046
        $region60: #{tpu_custom_call.1} parent=55 // pred_fallthru
          _
      $region56: #{tpu_custom_call.1} parent=5 // pred_fallthru
        _
      %p1064 = scmp.le.s32.totalorder 2, %s18
      // Predicated region
      $region61: #{tpu_custom_call.1} parent=5 // pred_check
        %p1065 = pneg %p1064
      $region62: #{tpu_custom_call.1} parent=5 // pred_check_branch
        %1067 = sbr.rel (%p1065) target = $region64
      $region63: #{tpu_custom_call.1} parent=5 // pred_region
        %s1068 = ssub.s32 %s18, 2
        // Predicated region
        $region65: #{tpu_custom_call.1} parent=63 // pred_check
          %p1069 = pneg %p241
        $region66: #{tpu_custom_call.1} parent=63 // pred_check_branch
          %1071 = sbr.rel (%p1069) target = $region68
        $region67: #{tpu_custom_call.1} parent=63 // pred_region
          %s1072 = sand.u32 %s226, 1
          %s1073 = scalar_lea.sflag [#allocation4], %s1072
          %s1074 = sand.u32 %s226, 1
          %s1075 = smul.addr %s1074, 8
          %s1076 = scalar_lea.vmem [#allocation3], %s1075
          %1077 = dma.done %s1073, 128
        $region68: #{tpu_custom_call.1} parent=63 // pred_fallthru
          _
      $region64: #{tpu_custom_call.1} parent=5 // pred_fallthru
        _
    $region6: #{tpu_custom_call.1} parent=1 // loop_footer
      %s22 = sadd.s32 1, %s18
    $region7: #{tpu_custom_call.1} parent=1 // loop_footer_branch
      %17 = sbr.rel target = $region3
    $region8: #{tpu_custom_call.1} parent=1 // loop_exit
      _
    %1078 = vsyncpa [#allocation4], 1
    %s1079 = scalar_lea.sflag [#allocation4], 1
    %1080 = vsyncpa %s1079, 1

</llo_original>
